<compile_context>
chip_gen: v7x
topology: tpu7x:2x2x1
jax: 0.10.0
libtpu: 0.0.40
codegen_flags: <defaults>
</compile_context>

<pallas_src>
import functools

import jax
import jax.numpy as jnp
from jax.experimental import pallas as pl
from jax.experimental.pallas import tpu as pltpu


def _dueling_dqn_kernel(x_ref, w1_ref, b1_ref, wh_ref, bh_ref, out_ref, *,
                        act_dim: int, out_w: int, matmul_dtype):
    # ---- body: h = leaky_relu(x @ W1 + b1) ----
    x = x_ref[...]
    w1 = w1_ref[...]
    wh = wh_ref[...]
    if matmul_dtype is not None:           # bf16 MXU operands (v6e/v7x fast path)
        x = x.astype(matmul_dtype)
        w1 = w1.astype(matmul_dtype)
        wh = wh.astype(matmul_dtype)

    h = jnp.dot(x, w1, preferred_element_type=jnp.float32) + b1_ref[...]
    h = jnp.where(h >= 0, h, 0.01 * h)     # leaky_relu (slope 0.01), f32 on VPU

    # ---- fused heads: [V | A] = h @ [Wv | Wa] + [bv | ba] ----
    hm = h.astype(matmul_dtype) if matmul_dtype is not None else h
    va = jnp.dot(hm, wh, preferred_element_type=jnp.float32) + bh_ref[...]
    V = va[:, 0:1]                          # (TB, 1)
    A = va[:, 1:1 + act_dim]                # (TB, ACT)

    # ---- dueling combine ----
    A_mean = jnp.mean(A, axis=1, keepdims=True)
    Q = V + (A - A_mean)                    # (TB, ACT), f32

    # ---- softmax / entropy (stable; no log_probs materialization) ----
    q_max = jnp.max(Q, axis=1, keepdims=True)
    q_shift = Q - q_max
    exp_q = jnp.exp(q_shift)
    denom = jnp.sum(exp_q, axis=1, keepdims=True)
    probs = exp_q * pl.reciprocal(denom, approx=True)     # EUP vrcp (free slot)
    ent = jnp.log(denom) - jnp.sum(probs * q_shift, axis=1, keepdims=True)

    # ---- argmax over actions (first occurrence, like torch.max indices) ----
    idx = jax.lax.broadcasted_iota(jnp.int32, Q.shape, 1)
    masked = jnp.where(Q == q_max, idx, jnp.int32(act_dim))
    a_star = jnp.min(masked, axis=1, keepdims=True).astype(jnp.float32)

    # ---- pack everything into one lane-dense slab, single unmasked store ----
    # layout: [ V | A | Q | entropy | argmax | zero-pad ]  -> (TB, out_w)
    pack_w = 2 * act_dim + 3
    pieces = [V, A, Q, ent, a_star]
    if out_w > pack_w:
        pieces.append(jnp.zeros((V.shape[0], out_w - pack_w), jnp.float32))
    out_ref[...] = jnp.concatenate(pieces, axis=1)


def categorical_dueling_dqn_forward(x, params, *, block_b: int = 128,
                                    matmul_dtype=None):
    """Fused forward pass. Returns a dict mirroring the PyTorch module.

    matmul_dtype=None keeps f32 MXU operands; jnp.bfloat16 casts matmul
    operands only (f32 accumulation) -- the v6e/v7x high-throughput path.
    """
    w1, b1, wv, bv, wa, ba = (params[k] for k in ("w1", "b1", "wv", "bv", "wa", "ba"))
    B, in_dim = x.shape
    hid = w1.shape[1]
    act_dim = wa.shape[1]

    # Fuse the two heads into a single matmul; fold both biases into one row.
    w_head = jnp.concatenate([wv, wa], axis=1)          # (HID, 1+ACT)
    b_head = jnp.concatenate([bv, ba], axis=1)          # (1,  1+ACT)

    pack_w = 2 * act_dim + 3                            # V | A | Q | ent | argmax
    out_w = 128 * pl.cdiv(pack_w, 128)                  # lane-dense output slab

    # Batch tiling: TB rows per grid step (TB=128 keeps the per-step footprint
    # tiny even against v7x's 64 MiB VMEM); pad B up to a multiple of TB.
    tb = min(block_b, B)
    b_pad = tb * pl.cdiv(B, tb)
    x_in = x if b_pad == B else jnp.pad(x, ((0, b_pad - B), (0, 0)))

    kernel = functools.partial(_dueling_dqn_kernel, act_dim=act_dim,
                               out_w=out_w, matmul_dtype=matmul_dtype)

    packed = pl.pallas_call(
        kernel,
        out_shape=jax.ShapeDtypeStruct((b_pad, out_w), jnp.float32),
        grid_spec=pltpu.PrefetchScalarGridSpec(
            num_scalar_prefetch=0,
            grid=(b_pad // tb,),
            in_specs=[
                pl.BlockSpec((tb, in_dim), lambda i: (i, 0)),        # x (batch-tiled)
                pl.BlockSpec((in_dim, hid), lambda i: (0, 0)),       # W1 (resident)
                pl.BlockSpec((1, hid), lambda i: (0, 0)),            # b1 (resident)
                pl.BlockSpec((hid, 1 + act_dim), lambda i: (0, 0)),  # fused head W
                pl.BlockSpec((1, 1 + act_dim), lambda i: (0, 0)),    # fused head b
            ],
            out_specs=pl.BlockSpec((tb, out_w), lambda i: (i, 0)),
        ),
        compiler_params=pltpu.CompilerParams(
            dimension_semantics=("parallel",)),
    )(x_in, w1, b1, w_head, b_head)

    packed = packed[:B]
    V = packed[:, 0:1]
    A = packed[:, 1:1 + act_dim]
    Q = packed[:, 1 + act_dim:1 + 2 * act_dim]
    ent = packed[:, 1 + 2 * act_dim]
    a_star = packed[:, 2 + 2 * act_dim].astype(jnp.int32)  # small ints, exact in f32

    return {"V": V, "A": A, "Q": Q, "a": a_star, "entropy": ent}


def init_params(key, in_dim, hidden_dim, action_dim):
    k1, k2, k3 = jax.random.split(key, 3)
    scale1 = 1.0 / jnp.sqrt(in_dim)
    scale2 = 1.0 / jnp.sqrt(hidden_dim)
    return {
        "w1": jax.random.uniform(k1, (in_dim, hidden_dim), jnp.float32, -scale1, scale1),
        "b1": jnp.zeros((1, hidden_dim), jnp.float32),
        "wv": jax.random.uniform(k2, (hidden_dim, 1), jnp.float32, -scale2, scale2),
        "bv": jnp.zeros((1, 1), jnp.float32),
        "wa": jax.random.uniform(k3, (hidden_dim, action_dim), jnp.float32, -scale2, scale2),
        "ba": jnp.zeros((1, action_dim), jnp.float32),
    }


def _reference_forward(x, params):
    hp = jax.lax.Precision.HIGHEST
    h = jnp.dot(x, params["w1"], precision=hp) + params["b1"]
    h = jnp.where(h >= 0, h, 0.01 * h)
    V = jnp.dot(h, params["wv"], precision=hp) + params["bv"]
    A = jnp.dot(h, params["wa"], precision=hp) + params["ba"]
    Q = V + (A - A.mean(axis=1, keepdims=True))
    p = jax.nn.softmax(Q, axis=-1)
    ent = -(p * jnp.log(p)).sum(axis=-1)
    return {"V": V, "A": A, "Q": Q, "a": jnp.argmax(Q, axis=1), "entropy": ent}


if __name__ == "__main__":
    B, IN_DIM, HID, ACT = 8, 16, 32, 6

    key = jax.random.PRNGKey(0)
    kx, kp = jax.random.split(key)
    x = jax.random.normal(kx, (B, IN_DIM), jnp.float32)
    params = init_params(kp, IN_DIM, HID, ACT)

    ref = _reference_forward(x, params)

    # --- f32 MXU operands: tight checks against the pure-JAX reference ---
    out = categorical_dueling_dqn_forward(x, params, matmul_dtype=None)
    jax.block_until_ready(out)
    assert out["V"].shape == (B, 1) and out["A"].shape == (B, ACT)
    assert out["Q"].shape == (B, ACT) and out["a"].shape == (B,) and out["entropy"].shape == (B,)
    assert jnp.allclose(out["V"], ref["V"], atol=2e-3), "V mismatch"
    assert jnp.allclose(out["A"], ref["A"], atol=2e-3), "A mismatch"
    assert jnp.allclose(out["Q"], ref["Q"], atol=2e-3), "Q mismatch"
    # argmax semantics: a == argmax of the returned Q (first occurrence).
    assert jnp.all(out["a"] == jnp.argmax(out["Q"], axis=1)), "argmax not consistent with Q"
    # entropy uses approx reciprocal on the EUP -> slightly looser tolerance.
    assert jnp.allclose(out["entropy"], ref["entropy"], atol=2e-2), "entropy mismatch"

    # --- bf16 MXU operands / f32 accumulation (v6e / v7x fast path) ---
    out_bf16 = categorical_dueling_dqn_forward(x, params, matmul_dtype=jnp.bfloat16)
    jax.block_until_ready(out_bf16)
    assert jnp.allclose(out_bf16["Q"], ref["Q"], atol=0.1), "bf16 Q drifted too far"
    assert jnp.all(out_bf16["a"] == jnp.argmax(out_bf16["Q"], axis=1)), \
        "bf16 argmax not consistent with Q"

    print("KERNEL_OK")
</pallas_src>

<mosaic_0001>
module attributes {stable_mosaic.version = 11 : i64} {
  func.func @_dueling_dqn_kernel(%arg0: i32, %arg1: memref<8x16xf32, #tpu.memory_space<vmem>>, %arg2: memref<16x32xf32, #tpu.memory_space<vmem>>, %arg3: memref<1x32xf32, #tpu.memory_space<vmem>>, %arg4: memref<32x7xf32, #tpu.memory_space<vmem>>, %arg5: memref<1x7xf32, #tpu.memory_space<vmem>>, %arg6: memref<8x128xf32, #tpu.memory_space<vmem>>) attributes {dimension_semantics = [#tpu.dimension_semantics<parallel>], iteration_bounds = array<i64: 1>, scalar_prefetch = 0 : i64, scratch_operands = 0 : i64, tpu.core_type = #tpu.core_type<tc>, window_params = [{transform_indices = @transform_0, window_bounds = array<i64: 8, 16>}, {pipeline_mode = #tpu.pipeline_mode<synchronous>, transform_indices = @transform_1, window_bounds = array<i64: 16, 32>}, {pipeline_mode = #tpu.pipeline_mode<synchronous>, transform_indices = @transform_2, window_bounds = array<i64: 1, 32>}, {pipeline_mode = #tpu.pipeline_mode<synchronous>, transform_indices = @transform_3, window_bounds = array<i64: 32, 7>}, {pipeline_mode = #tpu.pipeline_mode<synchronous>, transform_indices = @transform_4, window_bounds = array<i64: 1, 7>}, {transform_indices = @transform_5, window_bounds = array<i64: 8, 128>}]} {
    %c0 = arith.constant 0 : index
    %c0_0 = arith.constant 0 : index
    %0 = vector.load %arg1[%c0, %c0_0] : memref<8x16xf32, #tpu.memory_space<vmem>>, vector<8x16xf32>
    %c0_1 = arith.constant 0 : index
    %c0_2 = arith.constant 0 : index
    %1 = vector.load %arg2[%c0_1, %c0_2] : memref<16x32xf32, #tpu.memory_space<vmem>>, vector<16x32xf32>
    %c0_3 = arith.constant 0 : index
    %c0_4 = arith.constant 0 : index
    %2 = vector.load %arg4[%c0_3, %c0_4] : memref<32x7xf32, #tpu.memory_space<vmem>>, vector<32x7xf32>
    %cst = arith.constant dense<0.000000e+00> : vector<8x32xf32>
    %3 = tpu.matmul %0, %1, %cst {dimension_numbers = #tpu.dot_dimension_numbers<[1], [0], [0], [1], [0, 0, 1, 1], [], []>} : vector<8x16xf32>, vector<16x32xf32>, vector<8x32xf32> -> vector<8x32xf32>
    %c0_5 = arith.constant 0 : index
    %c0_6 = arith.constant 0 : index
    %4 = vector.load %arg3[%c0_5, %c0_6] : memref<1x32xf32, #tpu.memory_space<vmem>>, vector<1x32xf32>
    %5 = vector.broadcast %4 : vector<1x32xf32> to vector<8x32xf32>
    %6 = arith.addf %3, %5 : vector<8x32xf32>
    %cst_7 = arith.constant 0.000000e+00 : f32
    %7 = vector.broadcast %cst_7 : f32 to vector<8x32xf32>
    %8 = arith.cmpf oge, %6, %7 : vector<8x32xf32>
    %cst_8 = arith.constant 0.00999999977 : f32
    %9 = vector.broadcast %cst_8 : f32 to vector<8x32xf32>
    %10 = arith.mulf %9, %6 : vector<8x32xf32>
    %11 = arith.select %8, %6, %10 : vector<8x32xi1>, vector<8x32xf32>
    %cst_9 = arith.constant dense<0.000000e+00> : vector<8x7xf32>
    %12 = tpu.matmul %11, %2, %cst_9 {dimension_numbers = #tpu.dot_dimension_numbers<[1], [0], [0], [1], [0, 0, 1, 1], [], []>} : vector<8x32xf32>, vector<32x7xf32>, vector<8x7xf32> -> vector<8x7xf32>
    %c0_10 = arith.constant 0 : index
    %c0_11 = arith.constant 0 : index
    %13 = vector.load %arg5[%c0_10, %c0_11] : memref<1x7xf32, #tpu.memory_space<vmem>>, vector<1x7xf32>
    %14 = vector.broadcast %13 : vector<1x7xf32> to vector<8x7xf32>
    %15 = arith.addf %12, %14 : vector<8x7xf32>
    %16 = vector.extract_strided_slice %15 {offsets = [0, 0], sizes = [8, 1], strides = [1, 1]} : vector<8x7xf32> to vector<8x1xf32>
    %17 = vector.extract_strided_slice %15 {offsets = [0, 1], sizes = [8, 6], strides = [1, 1]} : vector<8x7xf32> to vector<8x6xf32>
    %cst_12 = arith.constant dense<0.000000e+00> : vector<8xf32>
    %18 = vector.multi_reduction <add>, %17, %cst_12 [1] : vector<8x6xf32> to vector<8xf32>
    %19 = vector.shape_cast %18 : vector<8xf32> to vector<8x1xf32>
    %cst_13 = arith.constant 6.000000e+00 : f32
    %20 = vector.broadcast %cst_13 : f32 to vector<8x1xf32>
    %21 = arith.divf %19, %20 : vector<8x1xf32>
    %22 = vector.broadcast %21 : vector<8x1xf32> to vector<8x6xf32>
    %23 = arith.subf %17, %22 : vector<8x6xf32>
    %24 = vector.broadcast %16 : vector<8x1xf32> to vector<8x6xf32>
    %25 = arith.addf %24, %23 : vector<8x6xf32>
    %cst_14 = arith.constant dense<0xFF800000> : vector<8xf32>
    %26 = vector.multi_reduction <maximumf>, %25, %cst_14 [1] : vector<8x6xf32> to vector<8xf32>
    %27 = vector.shape_cast %26 : vector<8xf32> to vector<8x1xf32>
    %28 = vector.broadcast %27 : vector<8x1xf32> to vector<8x6xf32>
    %29 = arith.subf %25, %28 : vector<8x6xf32>
    %30 = math.exp %29 : vector<8x6xf32>
    %cst_15 = arith.constant dense<0.000000e+00> : vector<8xf32>
    %31 = vector.multi_reduction <add>, %30, %cst_15 [1] : vector<8x6xf32> to vector<8xf32>
    %32 = vector.shape_cast %31 : vector<8xf32> to vector<8x1xf32>
    %33 = tpu.reciprocal %32 {approx = true} : vector<8x1xf32> -> vector<8x1xf32>
    %34 = vector.broadcast %33 : vector<8x1xf32> to vector<8x6xf32>
    %35 = arith.mulf %30, %34 : vector<8x6xf32>
    %36 = math.log %32 : vector<8x1xf32>
    %37 = arith.mulf %35, %29 : vector<8x6xf32>
    %cst_16 = arith.constant dense<0.000000e+00> : vector<8xf32>
    %38 = vector.multi_reduction <add>, %37, %cst_16 [1] : vector<8x6xf32> to vector<8xf32>
    %39 = vector.shape_cast %38 : vector<8xf32> to vector<8x1xf32>
    %40 = arith.subf %36, %39 : vector<8x1xf32>
    %41 = tpu.iota {dimensions = array<i32: 1>} : vector<8x6xi32>
    %42 = vector.broadcast %27 : vector<8x1xf32> to vector<8x6xf32>
    %43 = arith.cmpf oeq, %25, %42 : vector<8x6xf32>
    %c6_i32 = arith.constant 6 : i32
    %44 = vector.broadcast %c6_i32 : i32 to vector<8x6xi32>
    %45 = arith.select %43, %41, %44 : vector<8x6xi1>, vector<8x6xi32>
    %cst_17 = arith.constant dense<2147483647> : vector<8xi32>
    %46 = vector.multi_reduction <minsi>, %45, %cst_17 [1] : vector<8x6xi32> to vector<8xi32>
    %47 = vector.shape_cast %46 : vector<8xi32> to vector<8x1xi32>
    %48 = arith.sitofp %47 : vector<8x1xi32> to vector<8x1xf32>
    %cst_18 = arith.constant 0.000000e+00 : f32
    %49 = vector.broadcast %cst_18 : f32 to vector<8x113xf32>
    %50 = tpu.concatenate %16, %17, %25, %40, %48, %49 in 1 : vector<8x1xf32>, vector<8x6xf32>, vector<8x6xf32>, vector<8x1xf32>, vector<8x1xf32>, vector<8x113xf32> -> vector<8x128xf32>
    %c0_19 = arith.constant 0 : index
    %c0_20 = arith.constant 0 : index
    %51 = vector.load %arg6[%c0_19, %c0_20] : memref<8x128xf32, #tpu.memory_space<vmem>>, vector<8x128xf32>
    tpu.vector_store %arg6[%c0_19, %c0_20], %50 {strides = array<i32>} : memref<8x128xf32, #tpu.memory_space<vmem>>, vector<8x128xf32>,
    return
  }
  func.func @transform_0(%arg0: i32) -> (i32, i32) {
    %c0_i32 = arith.constant 0 : i32
    %c0_i32_0 = arith.constant 0 : i32
    return %arg0, %c0_i32 : i32, i32
  }
  func.func @transform_1(%arg0: i32) -> (i32, i32) {
    %c0_i32 = arith.constant 0 : i32
    %c0_i32_0 = arith.constant 0 : i32
    %c0_i32_1 = arith.constant 0 : i32
    return %c0_i32, %c0_i32_0 : i32, i32
  }
  func.func @transform_2(%arg0: i32) -> (i32, i32) {
    %c0_i32 = arith.constant 0 : i32
    %c0_i32_0 = arith.constant 0 : i32
    %c0_i32_1 = arith.constant 0 : i32
    return %c0_i32, %c0_i32_0 : i32, i32
  }
  func.func @transform_3(%arg0: i32) -> (i32, i32) {
    %c0_i32 = arith.constant 0 : i32
    %c0_i32_0 = arith.constant 0 : i32
    %c0_i32_1 = arith.constant 0 : i32
    return %c0_i32, %c0_i32_0 : i32, i32
  }
  func.func @transform_4(%arg0: i32) -> (i32, i32) {
    %c0_i32 = arith.constant 0 : i32
    %c0_i32_0 = arith.constant 0 : i32
    %c0_i32_1 = arith.constant 0 : i32
    return %c0_i32, %c0_i32_0 : i32, i32
  }
  func.func @transform_5(%arg0: i32) -> (i32, i32) {
    %c0_i32 = arith.constant 0 : i32
    %c0_i32_0 = arith.constant 0 : i32
    return %arg0, %c0_i32 : i32, i32
  }
}

</mosaic_0001>

<llo_original>
// kernel: tpu_custom_call.1
$region0: #{tpu_custom_call.1}
  #allocation0 [shape = 'u32[]', space=smem, size = 0x4, offset = 0x4, fixed_abs, tag = 'smem constant byte address 0x4 - core index']
  #allocation1 [shape = 'u32[144,128]{1,0:T(1,128)}', space=vmem, size = 0x12000, scoped, tag = 'internal scratch']
  %s0 = inlined_call_operand.vmem [shape: f32[8,16], index: 0, kind: input, shape index: {}]
  %s1 = inlined_call_operand.vmem [shape: f32[16,32], index: 1, kind: input, shape index: {}]
  %s2 = inlined_call_operand.vmem [shape: f32[1,32], index: 2, kind: input, shape index: {}]
  %s3 = inlined_call_operand.vmem [shape: f32[32,7], index: 3, kind: input, shape index: {}]
  %s4 = inlined_call_operand.vmem [shape: f32[1,7], index: 4, kind: input, shape index: {}]
  %s5 = inlined_call_operand.hbm [shape: f32[8,128], index: 5, kind: output, shape index: {}]
  %s6 = sld [smem:[#allocation0]]
  $region30: #{tpu_custom_call.1} parent=0
    _
  %s8 = ssub.s32 1, %s6
  %s9 = scalar_select 0, %s8, %s6
  $region1: #{tpu_custom_call.1} parent=0
    #allocation2 [shape = 'u8[4096]{0}', space=vmem, size = 0x1000, scoped, tag = 'output window, operand 0, single buffered']
    #allocation3 [shape = 's32[1]{0}', space=sflag, size = 0x4, scoped, tag = 'scoped memory for tpu_custom_call.1']
    %10 = vsyncpa [#allocation3], 0
    // Predicated region
    $region2: #{tpu_custom_call.1} parent=1 // pred_check
      _
    $region3: #{tpu_custom_call.1} parent=1 // pred_check_branch
      %12 = sbr.rel (0) target = $region5
    $region4: #{tpu_custom_call.1} parent=1 // pred_region
      _
    $region5: #{tpu_custom_call.1} parent=1 // pred_fallthru
      _
    // Predicated region
    $region6: #{tpu_custom_call.1} parent=1 // pred_check
      _
    $region7: #{tpu_custom_call.1} parent=1 // pred_check_branch
      %14 = sbr.rel (0) target = $region9
    $region8: #{tpu_custom_call.1} parent=1 // pred_region
      _
    $region9: #{tpu_custom_call.1} parent=1 // pred_fallthru
      _
    // Predicated region
    $region10: #{tpu_custom_call.1} parent=1 // pred_check
      _
    $region11: #{tpu_custom_call.1} parent=1 // pred_check_branch
      %16 = sbr.rel (0) target = $region13
    $region12: #{tpu_custom_call.1} parent=1 // pred_region
      _
    $region13: #{tpu_custom_call.1} parent=1 // pred_fallthru
      _
    // Predicated region
    $region14: #{tpu_custom_call.1} parent=1 // pred_check
      _
    $region15: #{tpu_custom_call.1} parent=1 // pred_check_branch
      %18 = sbr.rel (0) target = $region17
    $region16: #{tpu_custom_call.1} parent=1 // pred_region
      _
    $region17: #{tpu_custom_call.1} parent=1 // pred_fallthru
      _
    // Predicated region
    $region18: #{tpu_custom_call.1} parent=1 // pred_check
      _
    $region19: #{tpu_custom_call.1} parent=1 // pred_check_branch
      %20 = sbr.rel (0) target = $region21
    $region20: #{tpu_custom_call.1} parent=1 // pred_region
      _
    $region21: #{tpu_custom_call.1} parent=1 // pred_fallthru
      _
    %v21 = vld [vmem:[%s0] sm:$0xff]
    %v22 = vld [vmem:[%s1] sm:$0xff]
    %v23 = vld [vmem:[%s1 + $0x8] sm:$0xff]
    %v24 = vld [vmem:[%s3] sm:$0xff]
    %v25 = vld [vmem:[%s3 + $0x8] sm:$0xff]
    %v26 = vld [vmem:[%s3 + $0x10] sm:$0xff]
    %v27 = vld [vmem:[%s3 + $0x18] sm:$0xff]
    %v28 = vld [vmem:[%s2] sm:$0x1]
    %v30 = vlaneseq
    %v31 = vshrl.u32 %v30, 7
    %v32 = vsub.s32 0, %v31
    %v33 = vrot.slane %v28, %v32
    %vm35 = vcmask 130048
    %v37 = vsel %vm35, %v21, 0
    %39 = vmatprep.subr.mxu0 0.0
    %40 = vmatpush1.msra.mxu0 %v22
    %41 = vmatprep.subr.mxu0 0.0
    %42 = vmatpush1.msra.mxu0 %v23
    %43 = vmatprep.subr.mxu0 0.0
    %44 = vmatpush1.msra.mxu0 0.0
    %45 = vmatprep.subr.mxu0 0.0
    %46 = vmatpush1.msra.mxu0 0.0
    %47 = vmatprep.subr.mxu0 0.0
    %48 = vmatpush1.msra.mxu0 0.0
    %49 = vmatprep.subr.mxu0 0.0
    %50 = vmatpush1.msra.mxu0 0.0
    %51 = vmatprep.subr.mxu0 0.0
    %52 = vmatpush1.msra.mxu0 0.0
    %53 = vmatprep.subr.mxu0 0.0
    %54 = vmatpush1.msra.mxu0 0.0
    %55 = vmatprep.subr.mxu0 0.0
    %56 = vmatpush1.msra.mxu0 0.0
    %57 = vmatprep.subr.mxu0 0.0
    %58 = vmatpush1.msra.mxu0 0.0
    %59 = vmatprep.subr.mxu0 0.0
    %60 = vmatpush1.msra.mxu0 0.0
    %61 = vmatprep.subr.mxu0 0.0
    %62 = vmatpush1.msra.mxu0 0.0
    %63 = vmatprep.subr.mxu0 0.0
    %64 = vmatpush1.msra.mxu0 0.0
    %65 = vmatprep.subr.mxu0 0.0
    %66 = vmatpush1.msra.mxu0 0.0
    %67 = vmatprep.subr.mxu0 0.0
    %68 = vmatpush1.msra.mxu0 0.0
    %69 = vmatprep.subr.mxu0 0.0
    %70 = vmatpush1.msra.mxu0 0.0
    %71 = vmatprep.subr.mxu0 0.0
    %72 = vmatpush1.msra.mxu0 0.0
    %73 = vmatprep.subr.mxu0 0.0
    %74 = vmatpush1.msra.mxu0 0.0
    %75 = vmatprep.subr.mxu0 0.0
    %76 = vmatpush1.msra.mxu0 0.0
    %77 = vmatprep.subr.mxu0 0.0
    %78 = vmatpush1.msra.mxu0 0.0
    %79 = vmatprep.subr.mxu0 0.0
    %80 = vmatpush1.msra.mxu0 0.0
    %81 = vmatprep.subr.mxu0 0.0
    %82 = vmatpush1.msra.mxu0 0.0
    %83 = vmatprep.subr.mxu0 0.0
    %84 = vmatpush1.msra.mxu0 0.0
    %85 = vmatprep.subr.mxu0 0.0
    %86 = vmatpush1.msra.mxu0 0.0
    %87 = vmatprep.subr.mxu0 0.0
    %88 = vmatpush1.msra.mxu0 0.0
    %89 = vmatprep.subr.mxu0 0.0
    %90 = vmatpush1.msra.mxu0 0.0
    %91 = vmatprep.subr.mxu0 0.0
    %92 = vmatpush1.msra.mxu0 0.0
    %93 = vmatprep.subr.mxu0 0.0
    %94 = vmatpush1.msra.mxu0 0.0
    %95 = vmatprep.subr.mxu0 0.0
    %96 = vmatpush1.msra.mxu0 0.0
    %97 = vmatprep.subr.mxu0 0.0
    %98 = vmatpush1.msra.mxu0 0.0
    %99 = vmatprep.subr.mxu0 0.0
    %100 = vmatpush1.msra.mxu0 0.0
    %101 = vmatprep.subr.mxu0 0.0
    %102 = vmatpush1.msra.mxu0 0.0
    %103 = vmatprep.mubr.f32.mxu0 0.0
    %104 = vmatmul.mubr.f32.gmra.mrb[0].mxu0 %v37
    %v105 = vpop.f32.mrb[0].mxu0
    %v106 = vadd.f32 %v33, %v105
    %v107 = vpop.f32.mrb[0].mxu0
    %108 = vdwg.mxu0
    %vm109 = vcmp.ge.f32.partialorder %v106, 0.0
    %v110 = vmul.f32 %v106, 0.01
    %v111 = vsel %vm109, %v106, %v110
    %v112 = vld [vmem:[%s4] sm:$0x1]
    %v114 = vlaneseq
    %v115 = vshrl.u32 %v114, 7
    %v116 = vsub.s32 0, %v115
    %v117 = vrot.slane %v112, %v116
    %vm119 = vcmask 261120
    %v121 = vsel %vm119, %v111, 0
    %123 = vmatprep.subr.mxu0 0.0
    %124 = vmatpush1.msra.mxu0 %v24
    %125 = vmatprep.subr.mxu0 0.0
    %126 = vmatpush1.msra.mxu0 %v25
    %127 = vmatprep.subr.mxu0 0.0
    %128 = vmatpush1.msra.mxu0 %v26
    %129 = vmatprep.subr.mxu0 0.0
    %130 = vmatpush1.msra.mxu0 %v27
    %131 = vmatprep.subr.mxu0 0.0
    %132 = vmatpush1.msra.mxu0 0.0
    %133 = vmatprep.subr.mxu0 0.0
    %134 = vmatpush1.msra.mxu0 0.0
    %135 = vmatprep.subr.mxu0 0.0
    %136 = vmatpush1.msra.mxu0 0.0
    %137 = vmatprep.subr.mxu0 0.0
    %138 = vmatpush1.msra.mxu0 0.0
    %139 = vmatprep.subr.mxu0 0.0
    %140 = vmatpush1.msra.mxu0 0.0
    %141 = vmatprep.subr.mxu0 0.0
    %142 = vmatpush1.msra.mxu0 0.0
    %143 = vmatprep.subr.mxu0 0.0
    %144 = vmatpush1.msra.mxu0 0.0
    %145 = vmatprep.subr.mxu0 0.0
    %146 = vmatpush1.msra.mxu0 0.0
    %147 = vmatprep.subr.mxu0 0.0
    %148 = vmatpush1.msra.mxu0 0.0
    %149 = vmatprep.subr.mxu0 0.0
    %150 = vmatpush1.msra.mxu0 0.0
    %151 = vmatprep.subr.mxu0 0.0
    %152 = vmatpush1.msra.mxu0 0.0
    %153 = vmatprep.subr.mxu0 0.0
    %154 = vmatpush1.msra.mxu0 0.0
    %155 = vmatprep.subr.mxu0 0.0
    %156 = vmatpush1.msra.mxu0 0.0
    %157 = vmatprep.subr.mxu0 0.0
    %158 = vmatpush1.msra.mxu0 0.0
    %159 = vmatprep.subr.mxu0 0.0
    %160 = vmatpush1.msra.mxu0 0.0
    %161 = vmatprep.subr.mxu0 0.0
    %162 = vmatpush1.msra.mxu0 0.0
    %163 = vmatprep.subr.mxu0 0.0
    %164 = vmatpush1.msra.mxu0 0.0
    %165 = vmatprep.subr.mxu0 0.0
    %166 = vmatpush1.msra.mxu0 0.0
    %167 = vmatprep.subr.mxu0 0.0
    %168 = vmatpush1.msra.mxu0 0.0
    %169 = vmatprep.subr.mxu0 0.0
    %170 = vmatpush1.msra.mxu0 0.0
    %171 = vmatprep.subr.mxu0 0.0
    %172 = vmatpush1.msra.mxu0 0.0
    %173 = vmatprep.subr.mxu0 0.0
    %174 = vmatpush1.msra.mxu0 0.0
    %175 = vmatprep.subr.mxu0 0.0
    %176 = vmatpush1.msra.mxu0 0.0
    %177 = vmatprep.subr.mxu0 0.0
    %178 = vmatpush1.msra.mxu0 0.0
    %179 = vmatprep.subr.mxu0 0.0
    %180 = vmatpush1.msra.mxu0 0.0
    %181 = vmatprep.subr.mxu0 0.0
    %182 = vmatpush1.msra.mxu0 0.0
    %183 = vmatprep.subr.mxu0 0.0
    %184 = vmatpush1.msra.mxu0 0.0
    %185 = vmatprep.subr.mxu0 0.0
    %186 = vmatpush1.msra.mxu0 0.0
    %187 = vmatprep.mubr.f32.mxu0 0.0
    %188 = vmatmul.mubr.f32.gmra.mrb[0].mxu0 %v121
    %v189 = vpop.f32.mrb[0].mxu0
    %v190 = vadd.f32 %v117, %v189
    %v191 = vpop.f32.mrb[0].mxu0
    %192 = vdwg.mxu0
    %194 = vrot.lane.b32.xlu0 %v190, 127
    %v195 = vpop.permute.xlu0 %194
    %vm197 = vcmask 48128
    %v198 = vsel %vm197, %v195, 0.0
    %199 = vadd.xlane.f32.xlu0 %v198
    %v200 = vpop.xlane.xlu0 %199
    %v201 = vrcp.pop 6.0
    %v202 = vmul.f32 %v200, %v201
    %v203 = vsub.f32 %v190, %v202
    %204 = vset.pattern.permute.xlu0 0
    %205 = vperm.xlu0 %204, %v190
    %v206 = vpop.permute.xlu0 %205
    %v208 = vadd.f32 %v206, %v203
    %vm209 = vcmask 56328
    %v210 = vsel %vm209, %v208, -inf
    %211 = vmax.xlane.f32.xlu0 %v210
    %v212 = vpop.xlane.xlu0 %211
    %v213 = vsub.f32 %v208, %v212
    %v214 = vmul.f32 %v213, 1.442695
    %v215 = vpow.pop %v214
    %217 = vrot.lane.b32.xlu0 %v215, 127
    %v218 = vpop.permute.xlu0 %217
    %v220 = vsel %vm197, %v218, 0.0
    %221 = vadd.xlane.f32.xlu0 %v220
    %v222 = vpop.xlane.xlu0 %221
    %v223 = vrcp.pop %v222
    %v224 = vmul.f32 %v215, %v223
    %v225 = vlog2.pop %v222
    %v226 = vmul.f32 %v225, 0.6931472
    %v227 = vmul.f32 %v224, %v213
    %229 = vrot.lane.b32.xlu0 %v227, 127
    %v230 = vpop.permute.xlu0 %229
    %v232 = vsel %vm197, %v230, 0.0
    %233 = vadd.xlane.f32.xlu0 %v232
    %v234 = vpop.xlane.xlu0 %233
    %v235 = vsub.f32 %v226, %v234
    %v236 = vlaneseq
    %v237 = vand.u32 %v236, 127
    %vm238 = vcmp.eq.f32.partialorder %v208, %v212
    %239 = vrot.lane.b32.xlu0 %v237, 1
    %v240 = vpop.permute.xlu0 %239
    %v241 = vsel %vm238, %v240, 6
    %v242 = vsel %vm209, %v241, 2147483647
    %v243 = vand.u32 %v242, 65535
    %v244 = vshra.s32 %v242, 16
    %v245 = vcvt.s32.f32 %v243
    %v246 = vcvt.s32.f32 %v244
    %247 = vmin.xlane.f32.xlu0 %v246
    %v248 = vpop.xlane.xlu0 %247
    %vm249 = vcmp.eq.f32.partialorder %v246, %v248
    %v250 = vsel %vm249, %v245, inf
    %251 = vmin.xlane.f32.xlu0 %v250
    %v252 = vpop.xlane.xlu0 %251
    %v253 = vcvt.f32.s32 %v252
    %v254 = vcvt.f32.s32 %v248
    %v255 = vshll.u32 %v254, 16
    %v256 = vadd.s32 %v255, %v253
    %v257 = vcvt.s32.f32 %v256
    %259 = vrot.lane.b32.xlu0 %v208, 6
    %v260 = vpop.permute.xlu0 %259
    %vm262 = vcmask 56320
    %v263 = vsel %vm262, %v190, %v260
    %vm264 = vcmask 105472
    %v265 = vsel %vm264, %v263, %v235
    %vm266 = vcmask 113664
    %v267 = vsel %vm266, %v265, %v257
    %vm268 = vcmask 121856
    %v269 = vsel %vm268, %v267, 0.0
    %270 = vst [vmem:[#allocation2] sm:$0xff] %v269
    // Predicated region
    $region22: #{tpu_custom_call.1} parent=1 // pred_check
      _
    $region23: #{tpu_custom_call.1} parent=1 // pred_check_branch
      %272 = sbr.rel (0) target = $region25
    $region24: #{tpu_custom_call.1} parent=1 // pred_region
      %s274 = ssub.s32 128, 128
      %275 = vsyncadd [#allocation3], %s274
      %s277 = sshll.u32 [#allocation2], 4
      %s278 = int_to_ptr.vmem [resolvable:$true] %s277
      %280 = dma.vmem_to_hbm [thread:$0]  %s278, 128, %s5, [#allocation3]
    $region25: #{tpu_custom_call.1} parent=1 // pred_fallthru
      _
    // Predicated region
    $region26: #{tpu_custom_call.1} parent=1 // pred_check
      _
    $region27: #{tpu_custom_call.1} parent=1 // pred_check_branch
      %282 = sbr.rel (0) target = $region29
    $region28: #{tpu_custom_call.1} parent=1 // pred_region
      %283 = dma.done [#allocation3], 128
    $region29: #{tpu_custom_call.1} parent=1 // pred_fallthru
      _
    %284 = vsyncpa [#allocation3], 1

</llo_original>
